<compile_context>
chip_gen: v7x
topology: tpu7x:2x2x1
jax: 0.10.0
libtpu: 0.0.40
codegen_flags: <defaults>
</compile_context>

<pallas_src>
import functools
import math

import jax
import jax.numpy as jnp
from jax.experimental import pallas as pl
from jax.experimental.pallas import tpu as pltpu


def infonce_kernel(a_ref, bT_ref, w2_ref, b2_ref,      # inputs
                   lse_ref,                            # output
                   m_sc, l_sc,                         # VMEM scratch
                   *, n_total):
    # a_ref:  [BC, H]   x-side projections for this column block (j axis of T1)
    # bT_ref: [H, BR]   y-side projections (+ b1), transposed, for this row block
    # w2_ref: [H, 1]    second Linear weight (column vector); b2_ref: [1, 1]
    # lse_ref:[1, BR]   per-row log(N + sum_j exp(t_ij)) == logsumexp_j softplus
    # m_sc, l_sc: [1, BR] online-LSE running max / rescaled sum
    j = pl.program_id(1)

    @pl.when(j == 0)
    def _init():
        # logsumexp_j softplus(t_ij) = log(N + sum_j exp(t_ij)); the "+N"
        # (one per column) lives in l_sc's init, the raw-logit max starts at 0.
        m_sc[...] = jnp.zeros(m_sc.shape, jnp.float32)
        l_sc[...] = jnp.full(l_sc.shape, float(n_total), jnp.float32)

    a = a_ref[...]                                    # [BC, H]
    bT = bT_ref[...]                                  # [H, BR]

    # Pairwise first-layer pre-activation, rows (BR) on the 128-lane axis:
    #   pre[c, h, r] = a[c, h] + b[r, h]
    pre = a[:, :, None] + bT[None, :, :]              # [BC, H, BR]
    hid = jnp.maximum(pre, 0.0)                       # ReLU
    # w2 contraction over H (the sublane axis): VPU multiply + sublane reduce.
    # TODO(synk): this contraction could be pushed to the idle MXU (batched
    # [1,H]x[H,BR] einsum) or the multiply removed via |w2| prescale +
    # sign-split once the VPU becomes the saturating slot.
    t = jnp.sum(hid * w2_ref[...][None, :, :], axis=1) + b2_ref[...]   # [BC, BR]

    # Online (flash-style) logsumexp over the column axis (axis 0).
    m_prev = m_sc[...]
    m_new = jnp.maximum(m_prev, jnp.max(t, axis=0, keepdims=True))
    l_sc[...] = jnp.exp(m_prev - m_new) * l_sc[...] + jnp.sum(
        jnp.exp(t - m_new), axis=0, keepdims=True)
    m_sc[...] = m_new

    @pl.when(j == pl.num_programs(1) - 1)
    def _finalize():
        lse_ref[...] = m_sc[...] + jnp.log(l_sc[...])


def infonce_forward(x, y, params, *, block_rows=128, block_cols=128):
    N, Dx = x.shape
    Ny, Dy = y.shape
    assert N == Ny
    W1 = params["W1"].astype(jnp.float32)             # [Dx + Dy, H]
    b1 = params["b1"].astype(jnp.float32)             # [H]
    W2 = params["W2"].astype(jnp.float32)             # [H]
    b2 = params["b2"].astype(jnp.float32)             # [1]
    H = W1.shape[1]

    block_rows = min(block_rows, N)
    block_cols = min(block_cols, N)
    assert N % block_rows == 0 and N % block_cols == 0

    xf = x.astype(jnp.float32)
    yf = y.astype(jnp.float32)

    # Hoisted first-layer projections (O(N*H), done once by XLA).
    # TODO(synk): on v6e/v7x a/bT could be fed to the kernel in bf16 (f32
    # accumulation inside) to halve vreg pressure / DMA; kept f32 so the same
    # code is exact on v5e (no bf16 VALU) and matches the reference tolerance.
    a = jnp.dot(xf, W1[:Dx], preferred_element_type=jnp.float32)              # [N, H]
    b = jnp.dot(yf, W1[Dx:], preferred_element_type=jnp.float32) + b1[None]   # [N, H]
    bT = b.T                                                                  # [H, N]
    w2c = W2.reshape(H, 1)
    b2r = b2.reshape(1, 1)

    # Diagonal T0[i] = softplus(w2 . relu(a_i + b_i) + b2): O(N*H) wrapper work,
    # so the kernel needs no iota/where/diag accumulator.
    t0 = jnp.maximum(a + b, 0.0) @ w2c + b2r                                  # [N, 1]
    T0 = jnp.maximum(t0, 0.0) + jnp.log1p(jnp.exp(-jnp.abs(t0)))

    grid = (N // block_rows, N // block_cols)
    kernel = functools.partial(infonce_kernel, n_total=N)
    cost = pl.CostEstimate(
        flops=int(4 * N * N * H + 6 * N * N),
        transcendentals=int(N * N),
        bytes_accessed=int(4 * (N * H * (grid[0] + 1) + 3 * N)),
    )

    lse = pl.pallas_call(
        kernel,
        grid=grid,
        in_specs=[
            pl.BlockSpec((block_cols, H), lambda i, j: (j, 0)),   # a: column block
            pl.BlockSpec((H, block_rows), lambda i, j: (0, i)),   # bT: row block
            pl.BlockSpec((H, 1), lambda i, j: (0, 0)),            # w2
            pl.BlockSpec((1, 1), lambda i, j: (0, 0)),            # b2
        ],
        out_specs=pl.BlockSpec((1, block_rows), lambda i, j: (0, i)),
        out_shape=jax.ShapeDtypeStruct((1, N), jnp.float32),
        scratch_shapes=[
            pltpu.VMEM((1, block_rows), jnp.float32),   # running max
            pltpu.VMEM((1, block_rows), jnp.float32),   # running rescaled sum
        ],
        compiler_params=pltpu.CompilerParams(
            dimension_semantics=("parallel", "arbitrary"),
            vmem_limit_bytes=32 * 1024 * 1024),
        cost_estimate=cost,
    )(a, bT, w2c, b2r)

    # TODO(synk): for very large H on v7x (64 MiB VMEM), chunk the H
    # contraction (fori_loop over H slabs) or shrink block_cols so the
    # [BC, H, BR] temporaries stay within the scoped VMEM limit.
    lower_bound = jnp.mean(T0) - (jnp.mean(lse) - math.log(N))
    return lower_bound


def infonce_reference(x, y, params):
    # Pure-JAX transcription of the PyTorch forward for verification.
    N = y.shape[0]
    W1, b1, W2, b2 = params["W1"], params["b1"], params["W2"], params["b2"]

    def F(z):
        h = jnp.maximum(z @ W1 + b1, 0.0)
        t = h @ W2.reshape(-1, 1) + b2
        return jnp.maximum(t, 0.0) + jnp.log1p(jnp.exp(-jnp.abs(t)))

    T0 = F(jnp.concatenate([x, y], axis=-1))                          # [N, 1]
    x_tile = jnp.broadcast_to(x[None, :, :], (N, N, x.shape[1]))
    y_tile = jnp.broadcast_to(y[:, None, :], (N, N, y.shape[1]))
    T1 = F(jnp.concatenate([x_tile, y_tile], axis=-1))[..., 0]        # [N, N]
    lse = jax.scipy.special.logsumexp(T1, axis=1)                     # [N]
    return jnp.mean(T0) - (jnp.mean(lse) - jnp.log(N))


def init_params(key, x_dim, y_dim, hidden):
    # nn.Linear default init: U(-1/sqrt(fan_in), 1/sqrt(fan_in)).
    k1, k2, k3, k4 = jax.random.split(key, 4)
    din = x_dim + y_dim
    lim1 = 1.0 / math.sqrt(din)
    lim2 = 1.0 / math.sqrt(hidden)
    return dict(
        W1=jax.random.uniform(k1, (din, hidden), jnp.float32, -lim1, lim1),
        b1=jax.random.uniform(k2, (hidden,), jnp.float32, -lim1, lim1),
        W2=jax.random.uniform(k3, (hidden,), jnp.float32, -lim2, lim2),
        b2=jax.random.uniform(k4, (1,), jnp.float32, -lim2, lim2),
    )


if __name__ == "__main__":
    X_DIM, Y_DIM, HIDDEN = 16, 16, 32
    key = jax.random.PRNGKey(0)

    def check(n, **block_kwargs):
        kx, ky, kp = jax.random.split(jax.random.fold_in(key, n), 3)
        x = jax.random.normal(kx, (n, X_DIM), jnp.float32)
        y = jax.random.normal(ky, (n, Y_DIM), jnp.float32)
        params = init_params(kp, X_DIM, Y_DIM, HIDDEN)
        lb = jax.block_until_ready(infonce_forward(x, y, params, **block_kwargs))
        lb_ref = jax.block_until_ready(infonce_reference(x, y, params))
        assert jnp.allclose(lb, lb_ref, rtol=1e-4, atol=1e-5), (n, lb, lb_ref)

    check(16)                      # single block (grid 1x1)
    check(64, block_cols=16)       # online LSE accumulated across 4 column blocks
    check(256)                     # 2x2 grid of 128x128 blocks, full lane width

    print("KERNEL_OK")
</pallas_src>

<mosaic_0001>
module attributes {stable_mosaic.version = 11 : i64} {
  func.func @infonce_kernel(%arg0: i32, %arg1: i32, %arg2: memref<16x32xf32, #tpu.memory_space<vmem>>, %arg3: memref<32x16xf32, #tpu.memory_space<vmem>>, %arg4: memref<32x1xf32, #tpu.memory_space<vmem>>, %arg5: memref<1x1xf32, #tpu.memory_space<vmem>>, %arg6: memref<1x16xf32, #tpu.memory_space<vmem>>, %arg7: memref<1x16xf32, #tpu.memory_space<vmem>>, %arg8: memref<1x16xf32, #tpu.memory_space<vmem>>) attributes {dimension_semantics = [#tpu.dimension_semantics<parallel>, #tpu.dimension_semantics<arbitrary>], iteration_bounds = array<i64: 1, 1>, scalar_prefetch = 0 : i64, scratch_operands = 2 : i64, tpu.core_type = #tpu.core_type<tc>, window_params = [{transform_indices = @transform_0, window_bounds = array<i64: 16, 32>}, {transform_indices = @transform_1, window_bounds = array<i64: 32, 16>}, {pipeline_mode = #tpu.pipeline_mode<synchronous>, transform_indices = @transform_2, window_bounds = array<i64: 32, 1>}, {pipeline_mode = #tpu.pipeline_mode<synchronous>, transform_indices = @transform_3, window_bounds = array<i64: 1, 1>}, {transform_indices = @transform_4, window_bounds = array<i64: 1, 16>}]} {
    %c0_i32 = arith.constant 0 : i32
    %0 = arith.cmpi eq, %arg1, %c0_i32 : i32
    %1 = arith.extui %0 : i1 to i32
    %c0_i32_0 = arith.constant 0 : i32
    %2 = arith.cmpi ne, %1, %c0_i32_0 : i32
    scf.if %2 {
      %cst_21 = arith.constant 0.000000e+00 : f32
      %39 = vector.broadcast %cst_21 : f32 to vector<1x16xf32>
      %c0_22 = arith.constant 0 : index
      %c0_23 = arith.constant 0 : index
      %40 = vector.load %arg7[%c0_22, %c0_23] : memref<1x16xf32, #tpu.memory_space<vmem>>, vector<1x16xf32>
      tpu.vector_store %arg7[%c0_22, %c0_23], %39 {strides = array<i32>} : memref<1x16xf32, #tpu.memory_space<vmem>>, vector<1x16xf32>,
      %cst_24 = arith.constant 1.600000e+01 : f32
      %41 = vector.broadcast %cst_24 : f32 to vector<1x16xf32>
      %c0_25 = arith.constant 0 : index
      %c0_26 = arith.constant 0 : index
      %42 = vector.load %arg8[%c0_25, %c0_26] : memref<1x16xf32, #tpu.memory_space<vmem>>, vector<1x16xf32>
      tpu.vector_store %arg8[%c0_25, %c0_26], %41 {strides = array<i32>} : memref<1x16xf32, #tpu.memory_space<vmem>>, vector<1x16xf32>,
    } else {
    }
    %c0 = arith.constant 0 : index
    %c0_1 = arith.constant 0 : index
    %3 = vector.load %arg2[%c0, %c0_1] : memref<16x32xf32, #tpu.memory_space<vmem>>, vector<16x32xf32>
    %c0_2 = arith.constant 0 : index
    %c0_3 = arith.constant 0 : index
    %4 = vector.load %arg3[%c0_2, %c0_3] : memref<32x16xf32, #tpu.memory_space<vmem>>, vector<32x16xf32>
    %5 = vector.shape_cast %3 : vector<16x32xf32> to vector<16x32x1xf32>
    %6 = vector.shape_cast %4 : vector<32x16xf32> to vector<1x32x16xf32>
    %7 = vector.broadcast %5 : vector<16x32x1xf32> to vector<16x32x16xf32>
    %8 = vector.broadcast %6 : vector<1x32x16xf32> to vector<16x32x16xf32>
    %9 = arith.addf %7, %8 : vector<16x32x16xf32>
    %cst = arith.constant 0.000000e+00 : f32
    %10 = vector.broadcast %cst : f32 to vector<16x32x16xf32>
    %11 = arith.maximumf %9, %10 : vector<16x32x16xf32>
    %c0_4 = arith.constant 0 : index
    %c0_5 = arith.constant 0 : index
    %12 = vector.load %arg4[%c0_4, %c0_5] : memref<32x1xf32, #tpu.memory_space<vmem>>, vector<32x1xf32>
    %13 = vector.shape_cast %12 : vector<32x1xf32> to vector<1x32x1xf32>
    %14 = vector.broadcast %13 : vector<1x32x1xf32> to vector<16x32x16xf32>
    %15 = arith.mulf %11, %14 : vector<16x32x16xf32>
    %cst_6 = arith.constant dense<0.000000e+00> : vector<16x16xf32>
    %16 = vector.multi_reduction <add>, %15, %cst_6 [1] : vector<16x32x16xf32> to vector<16x16xf32>
    %c0_7 = arith.constant 0 : index
    %c0_8 = arith.constant 0 : index
    %17 = vector.load %arg5[%c0_7, %c0_8] : memref<1x1xf32, #tpu.memory_space<vmem>>, vector<1x1xf32>
    %18 = vector.broadcast %17 : vector<1x1xf32> to vector<16x16xf32>
    %19 = arith.addf %16, %18 : vector<16x16xf32>
    %c0_9 = arith.constant 0 : index
    %c0_10 = arith.constant 0 : index
    %20 = vector.load %arg7[%c0_9, %c0_10] : memref<1x16xf32, #tpu.memory_space<vmem>>, vector<1x16xf32>
    %cst_11 = arith.constant dense<0xFF800000> : vector<16xf32>
    %21 = vector.multi_reduction <maximumf>, %19, %cst_11 [0] : vector<16x16xf32> to vector<16xf32>
    %22 = vector.shape_cast %21 : vector<16xf32> to vector<1x16xf32>
    %23 = arith.maximumf %20, %22 : vector<1x16xf32>
    %24 = arith.subf %20, %23 : vector<1x16xf32>
    %25 = math.exp %24 : vector<1x16xf32>
    %c0_12 = arith.constant 0 : index
    %c0_13 = arith.constant 0 : index
    %26 = vector.load %arg8[%c0_12, %c0_13] : memref<1x16xf32, #tpu.memory_space<vmem>>, vector<1x16xf32>
    %27 = arith.mulf %25, %26 : vector<1x16xf32>
    %28 = vector.broadcast %23 : vector<1x16xf32> to vector<16x16xf32>
    %29 = arith.subf %19, %28 : vector<16x16xf32>
    %30 = math.exp %29 : vector<16x16xf32>
    %cst_14 = arith.constant dense<0.000000e+00> : vector<16xf32>
    %31 = vector.multi_reduction <add>, %30, %cst_14 [0] : vector<16x16xf32> to vector<16xf32>
    %32 = vector.shape_cast %31 : vector<16xf32> to vector<1x16xf32>
    %33 = arith.addf %27, %32 : vector<1x16xf32>
    %c0_15 = arith.constant 0 : index
    %c0_16 = arith.constant 0 : index
    %34 = vector.load %arg8[%c0_15, %c0_16] : memref<1x16xf32, #tpu.memory_space<vmem>>, vector<1x16xf32>
    tpu.vector_store %arg8[%c0_15, %c0_16], %33 {strides = array<i32>} : memref<1x16xf32, #tpu.memory_space<vmem>>, vector<1x16xf32>,
    %c0_17 = arith.constant 0 : index
    %c0_18 = arith.constant 0 : index
    %35 = vector.load %arg7[%c0_17, %c0_18] : memref<1x16xf32, #tpu.memory_space<vmem>>, vector<1x16xf32>
    tpu.vector_store %arg7[%c0_17, %c0_18], %23 {strides = array<i32>} : memref<1x16xf32, #tpu.memory_space<vmem>>, vector<1x16xf32>,
    %c0_i32_19 = arith.constant 0 : i32
    %36 = arith.cmpi eq, %arg1, %c0_i32_19 : i32
    %37 = arith.extui %36 : i1 to i32
    %c0_i32_20 = arith.constant 0 : i32
    %38 = arith.cmpi ne, %37, %c0_i32_20 : i32
    scf.if %38 {
      %c0_21 = arith.constant 0 : index
      %c0_22 = arith.constant 0 : index
      %39 = vector.load %arg7[%c0_21, %c0_22] : memref<1x16xf32, #tpu.memory_space<vmem>>, vector<1x16xf32>
      %c0_23 = arith.constant 0 : index
      %c0_24 = arith.constant 0 : index
      %40 = vector.load %arg8[%c0_23, %c0_24] : memref<1x16xf32, #tpu.memory_space<vmem>>, vector<1x16xf32>
      %41 = math.log %40 : vector<1x16xf32>
      %42 = arith.addf %39, %41 : vector<1x16xf32>
      %c0_25 = arith.constant 0 : index
      %c0_26 = arith.constant 0 : index
      %43 = vector.load %arg6[%c0_25, %c0_26] : memref<1x16xf32, #tpu.memory_space<vmem>>, vector<1x16xf32>
      tpu.vector_store %arg6[%c0_25, %c0_26], %42 {strides = array<i32>} : memref<1x16xf32, #tpu.memory_space<vmem>>, vector<1x16xf32>,
    } else {
    }
    return
  }
  func.func @transform_0(%arg0: i32, %arg1: i32) -> (i32, i32) {
    %c0_i32 = arith.constant 0 : i32
    %c0_i32_0 = arith.constant 0 : i32
    return %arg1, %c0_i32 : i32, i32
  }
  func.func @transform_1(%arg0: i32, %arg1: i32) -> (i32, i32) {
    %c0_i32 = arith.constant 0 : i32
    %c0_i32_0 = arith.constant 0 : i32
    return %c0_i32, %arg0 : i32, i32
  }
  func.func @transform_2(%arg0: i32, %arg1: i32) -> (i32, i32) {
    %c0_i32 = arith.constant 0 : i32
    %c0_i32_0 = arith.constant 0 : i32
    %c0_i32_1 = arith.constant 0 : i32
    return %c0_i32, %c0_i32_0 : i32, i32
  }
  func.func @transform_3(%arg0: i32, %arg1: i32) -> (i32, i32) {
    %c0_i32 = arith.constant 0 : i32
    %c0_i32_0 = arith.constant 0 : i32
    %c0_i32_1 = arith.constant 0 : i32
    return %c0_i32, %c0_i32_0 : i32, i32
  }
  func.func @transform_4(%arg0: i32, %arg1: i32) -> (i32, i32) {
    %c0_i32 = arith.constant 0 : i32
    %c0_i32_0 = arith.constant 0 : i32
    return %c0_i32, %arg0 : i32, i32
  }
}

</mosaic_0001>

<llo_original>
// kernel: tpu_custom_call.1
$region0: #{tpu_custom_call.1}
  #allocation0 [shape = 'u32[]', space=smem, size = 0x4, offset = 0x4, fixed_abs, tag = 'smem constant byte address 0x4 - core index']
  #allocation1 [shape = 'u32[144,128]{1,0:T(1,128)}', space=vmem, size = 0x12000, scoped, tag = 'internal scratch']
  #allocation2 [shape = 'f32[1,16]{1,0:T(1,128)}', space=vmem, size = 0x200, scoped, tag = 'scratch operand']
  #allocation3 [shape = 'f32[1,16]{1,0:T(1,128)}', space=vmem, size = 0x200, scoped, tag = 'scratch operand']
  #allocation4 [shape = 'f32[1,1]{1,0:T(1,128)S(1)}', space=vmem, size = 0x200, scoped, tag = 'scoped memory for tpu_custom_call.1']
  %s0 = inlined_call_operand.vmem [shape: f32[16,32], index: 0, kind: input, shape index: {}]
  %s1 = inlined_call_operand.vmem [shape: f32[32,16], index: 1, kind: input, shape index: {}]
  %s2 = inlined_call_operand.vmem [shape: f32[32,1], index: 2, kind: input, shape index: {}]
  %s3 = inlined_call_operand.<no memory space> [shape: f32[1,1], index: 3, kind: input, shape index: {}]
  %s4 = inlined_call_operand.hbm [shape: f32[1,16], index: 4, kind: output, shape index: {}]
  %s5 = sld [smem:[#allocation0]]
  $region34: #{tpu_custom_call.1} parent=0
    _
  %s7 = ssub.s32 1, %s5
  %s8 = scalar_select 0, %s7, %s5
  %v9 = vstv %s3
  %10 = vst [vmem:[#allocation4] sm:$0x1] %v9
  $region1: #{tpu_custom_call.1} parent=0
    #allocation5 [shape = 'u8[512]{0}', space=vmem, size = 0x400, scoped, tag = 'output window, operand 0, single buffered']
    #allocation6 [shape = 's32[1]{0}', space=sflag, size = 0x4, scoped, tag = 'scoped memory for tpu_custom_call.1']
    %11 = vsyncpa [#allocation6], 0
    // Predicated region
    $region2: #{tpu_custom_call.1} parent=1 // pred_check
      _
    $region3: #{tpu_custom_call.1} parent=1 // pred_check_branch
      %13 = sbr.rel (0) target = $region5
    $region4: #{tpu_custom_call.1} parent=1 // pred_region
      _
    $region5: #{tpu_custom_call.1} parent=1 // pred_fallthru
      _
    // Predicated region
    $region6: #{tpu_custom_call.1} parent=1 // pred_check
      _
    $region7: #{tpu_custom_call.1} parent=1 // pred_check_branch
      %15 = sbr.rel (0) target = $region9
    $region8: #{tpu_custom_call.1} parent=1 // pred_region
      _
    $region9: #{tpu_custom_call.1} parent=1 // pred_fallthru
      _
    // Predicated region
    $region10: #{tpu_custom_call.1} parent=1 // pred_check
      _
    $region11: #{tpu_custom_call.1} parent=1 // pred_check_branch
      %17 = sbr.rel (0) target = $region13
    $region12: #{tpu_custom_call.1} parent=1 // pred_region
      _
    $region13: #{tpu_custom_call.1} parent=1 // pred_fallthru
      _
    // Predicated region
    $region14: #{tpu_custom_call.1} parent=1 // pred_check
      _
    $region15: #{tpu_custom_call.1} parent=1 // pred_check_branch
      %19 = sbr.rel (0) target = $region17
    $region16: #{tpu_custom_call.1} parent=1 // pred_region
      _
    $region17: #{tpu_custom_call.1} parent=1 // pred_fallthru
      _
    %p20 = scmp.eq.s32.totalorder 0, 0
    // Predicated region
    $region18: #{tpu_custom_call.1} parent=1 // pred_check
      %p21 = pneg %p20
    $region19: #{tpu_custom_call.1} parent=1 // pred_check_branch
      %23 = sbr.rel (%p21) target = $region21
    $region20: #{tpu_custom_call.1} parent=1 // pred_region
      %vm24 = vcmask 122880
      %25 = vst.msk [vmem:[#allocation2] sm:$0x1] %vm24, 0.0
      %26 = vst.msk [vmem:[#allocation3] sm:$0x1] %vm24, 16.0
    $region21: #{tpu_custom_call.1} parent=1 // pred_fallthru
      _
    %v27 = vld [vmem:[%s0] sm:$0xff]
    %v28 = vld [vmem:[%s0 + $0x8] sm:$0xff]
    %v29 = vld [vmem:[%s1] sm:$0xff]
    %v30 = vld [vmem:[%s1 + $0x8] sm:$0xff]
    %v31 = vld [vmem:[%s1 + $0x10] sm:$0xff]
    %v32 = vld [vmem:[%s1 + $0x18] sm:$0xff]
    %v33 = vlaneseq
    %v34 = vshrl.u32 %v33, 7
    %v35 = vsub.s32 0, %v34
    %v36 = vrot.slane %v27, %v35
    %38 = vbcast.lane.b32.xlu0 %v36, 256
    %v39 = vpop.permute.xlu0 %38
    %s41 = sor.u32 256, 8
    %42 = vbcast.lane.b32.xlu0 %v36, %s41
    %v43 = vpop.permute.xlu0 %42
    %s45 = sor.u32 256, 16
    %46 = vbcast.lane.b32.xlu0 %v36, %s45
    %v47 = vpop.permute.xlu0 %46
    %s49 = sor.u32 256, 24
    %50 = vbcast.lane.b32.xlu0 %v36, %s49
    %v51 = vpop.permute.xlu0 %50
    %v52 = vlaneseq
    %v53 = vshrl.u32 %v52, 7
    %v54 = vsub.s32 1, %v53
    %v55 = vrot.slane %v27, %v54
    %57 = vbcast.lane.b32.xlu0 %v55, 256
    %v58 = vpop.permute.xlu0 %57
    %s60 = sor.u32 256, 8
    %61 = vbcast.lane.b32.xlu0 %v55, %s60
    %v62 = vpop.permute.xlu0 %61
    %s64 = sor.u32 256, 16
    %65 = vbcast.lane.b32.xlu0 %v55, %s64
    %v66 = vpop.permute.xlu0 %65
    %s68 = sor.u32 256, 24
    %69 = vbcast.lane.b32.xlu0 %v55, %s68
    %v70 = vpop.permute.xlu0 %69
    %v71 = vlaneseq
    %v72 = vshrl.u32 %v71, 7
    %v73 = vsub.s32 2, %v72
    %v74 = vrot.slane %v27, %v73
    %76 = vbcast.lane.b32.xlu0 %v74, 256
    %v77 = vpop.permute.xlu0 %76
    %s79 = sor.u32 256, 8
    %80 = vbcast.lane.b32.xlu0 %v74, %s79
    %v81 = vpop.permute.xlu0 %80
    %s83 = sor.u32 256, 16
    %84 = vbcast.lane.b32.xlu0 %v74, %s83
    %v85 = vpop.permute.xlu0 %84
    %s87 = sor.u32 256, 24
    %88 = vbcast.lane.b32.xlu0 %v74, %s87
    %v89 = vpop.permute.xlu0 %88
    %v90 = vlaneseq
    %v91 = vshrl.u32 %v90, 7
    %v92 = vsub.s32 3, %v91
    %v93 = vrot.slane %v27, %v92
    %95 = vbcast.lane.b32.xlu0 %v93, 256
    %v96 = vpop.permute.xlu0 %95
    %s98 = sor.u32 256, 8
    %99 = vbcast.lane.b32.xlu0 %v93, %s98
    %v100 = vpop.permute.xlu0 %99
    %s102 = sor.u32 256, 16
    %103 = vbcast.lane.b32.xlu0 %v93, %s102
    %v104 = vpop.permute.xlu0 %103
    %s106 = sor.u32 256, 24
    %107 = vbcast.lane.b32.xlu0 %v93, %s106
    %v108 = vpop.permute.xlu0 %107
    %v109 = vlaneseq
    %v110 = vshrl.u32 %v109, 7
    %v111 = vsub.s32 4, %v110
    %v112 = vrot.slane %v27, %v111
    %114 = vbcast.lane.b32.xlu0 %v112, 256
    %v115 = vpop.permute.xlu0 %114
    %s117 = sor.u32 256, 8
    %118 = vbcast.lane.b32.xlu0 %v112, %s117
    %v119 = vpop.permute.xlu0 %118
    %s121 = sor.u32 256, 16
    %122 = vbcast.lane.b32.xlu0 %v112, %s121
    %v123 = vpop.permute.xlu0 %122
    %s125 = sor.u32 256, 24
    %126 = vbcast.lane.b32.xlu0 %v112, %s125
    %v127 = vpop.permute.xlu0 %126
    %v128 = vlaneseq
    %v129 = vshrl.u32 %v128, 7
    %v130 = vsub.s32 5, %v129
    %v131 = vrot.slane %v27, %v130
    %133 = vbcast.lane.b32.xlu0 %v131, 256
    %v134 = vpop.permute.xlu0 %133
    %s136 = sor.u32 256, 8
    %137 = vbcast.lane.b32.xlu0 %v131, %s136
    %v138 = vpop.permute.xlu0 %137
    %s140 = sor.u32 256, 16
    %141 = vbcast.lane.b32.xlu0 %v131, %s140
    %v142 = vpop.permute.xlu0 %141
    %s144 = sor.u32 256, 24
    %145 = vbcast.lane.b32.xlu0 %v131, %s144
    %v146 = vpop.permute.xlu0 %145
    %v147 = vlaneseq
    %v148 = vshrl.u32 %v147, 7
    %v149 = vsub.s32 6, %v148
    %v150 = vrot.slane %v27, %v149
    %152 = vbcast.lane.b32.xlu0 %v150, 256
    %v153 = vpop.permute.xlu0 %152
    %s155 = sor.u32 256, 8
    %156 = vbcast.lane.b32.xlu0 %v150, %s155
    %v157 = vpop.permute.xlu0 %156
    %s159 = sor.u32 256, 16
    %160 = vbcast.lane.b32.xlu0 %v150, %s159
    %v161 = vpop.permute.xlu0 %160
    %s163 = sor.u32 256, 24
    %164 = vbcast.lane.b32.xlu0 %v150, %s163
    %v165 = vpop.permute.xlu0 %164
    %v166 = vlaneseq
    %v167 = vshrl.u32 %v166, 7
    %v168 = vsub.s32 7, %v167
    %v169 = vrot.slane %v27, %v168
    %171 = vbcast.lane.b32.xlu0 %v169, 256
    %v172 = vpop.permute.xlu0 %171
    %s174 = sor.u32 256, 8
    %175 = vbcast.lane.b32.xlu0 %v169, %s174
    %v176 = vpop.permute.xlu0 %175
    %s178 = sor.u32 256, 16
    %179 = vbcast.lane.b32.xlu0 %v169, %s178
    %v180 = vpop.permute.xlu0 %179
    %s182 = sor.u32 256, 24
    %183 = vbcast.lane.b32.xlu0 %v169, %s182
    %v184 = vpop.permute.xlu0 %183
    %v185 = vlaneseq
    %v186 = vshrl.u32 %v185, 7
    %v187 = vsub.s32 0, %v186
    %v188 = vrot.slane %v28, %v187
    %190 = vbcast.lane.b32.xlu0 %v188, 256
    %v191 = vpop.permute.xlu0 %190
    %s193 = sor.u32 256, 8
    %194 = vbcast.lane.b32.xlu0 %v188, %s193
    %v195 = vpop.permute.xlu0 %194
    %s197 = sor.u32 256, 16
    %198 = vbcast.lane.b32.xlu0 %v188, %s197
    %v199 = vpop.permute.xlu0 %198
    %s201 = sor.u32 256, 24
    %202 = vbcast.lane.b32.xlu0 %v188, %s201
    %v203 = vpop.permute.xlu0 %202
    %v204 = vlaneseq
    %v205 = vshrl.u32 %v204, 7
    %v206 = vsub.s32 1, %v205
    %v207 = vrot.slane %v28, %v206
    %209 = vbcast.lane.b32.xlu0 %v207, 256
    %v210 = vpop.permute.xlu0 %209
    %s212 = sor.u32 256, 8
    %213 = vbcast.lane.b32.xlu0 %v207, %s212
    %v214 = vpop.permute.xlu0 %213
    %s216 = sor.u32 256, 16
    %217 = vbcast.lane.b32.xlu0 %v207, %s216
    %v218 = vpop.permute.xlu0 %217
    %s220 = sor.u32 256, 24
    %221 = vbcast.lane.b32.xlu0 %v207, %s220
    %v222 = vpop.permute.xlu0 %221
    %v223 = vlaneseq
    %v224 = vshrl.u32 %v223, 7
    %v225 = vsub.s32 2, %v224
    %v226 = vrot.slane %v28, %v225
    %228 = vbcast.lane.b32.xlu0 %v226, 256
    %v229 = vpop.permute.xlu0 %228
    %s231 = sor.u32 256, 8
    %232 = vbcast.lane.b32.xlu0 %v226, %s231
    %v233 = vpop.permute.xlu0 %232
    %s235 = sor.u32 256, 16
    %236 = vbcast.lane.b32.xlu0 %v226, %s235
    %v237 = vpop.permute.xlu0 %236
    %s239 = sor.u32 256, 24
    %240 = vbcast.lane.b32.xlu0 %v226, %s239
    %v241 = vpop.permute.xlu0 %240
    %v242 = vlaneseq
    %v243 = vshrl.u32 %v242, 7
    %v244 = vsub.s32 3, %v243
    %v245 = vrot.slane %v28, %v244
    %247 = vbcast.lane.b32.xlu0 %v245, 256
    %v248 = vpop.permute.xlu0 %247
    %s250 = sor.u32 256, 8
    %251 = vbcast.lane.b32.xlu0 %v245, %s250
    %v252 = vpop.permute.xlu0 %251
    %s254 = sor.u32 256, 16
    %255 = vbcast.lane.b32.xlu0 %v245, %s254
    %v256 = vpop.permute.xlu0 %255
    %s258 = sor.u32 256, 24
    %259 = vbcast.lane.b32.xlu0 %v245, %s258
    %v260 = vpop.permute.xlu0 %259
    %v261 = vlaneseq
    %v262 = vshrl.u32 %v261, 7
    %v263 = vsub.s32 4, %v262
    %v264 = vrot.slane %v28, %v263
    %266 = vbcast.lane.b32.xlu0 %v264, 256
    %v267 = vpop.permute.xlu0 %266
    %s269 = sor.u32 256, 8
    %270 = vbcast.lane.b32.xlu0 %v264, %s269
    %v271 = vpop.permute.xlu0 %270
    %s273 = sor.u32 256, 16
    %274 = vbcast.lane.b32.xlu0 %v264, %s273
    %v275 = vpop.permute.xlu0 %274
    %s277 = sor.u32 256, 24
    %278 = vbcast.lane.b32.xlu0 %v264, %s277
    %v279 = vpop.permute.xlu0 %278
    %v280 = vlaneseq
    %v281 = vshrl.u32 %v280, 7
    %v282 = vsub.s32 5, %v281
    %v283 = vrot.slane %v28, %v282
    %285 = vbcast.lane.b32.xlu0 %v283, 256
    %v286 = vpop.permute.xlu0 %285
    %s288 = sor.u32 256, 8
    %289 = vbcast.lane.b32.xlu0 %v283, %s288
    %v290 = vpop.permute.xlu0 %289
    %s292 = sor.u32 256, 16
    %293 = vbcast.lane.b32.xlu0 %v283, %s292
    %v294 = vpop.permute.xlu0 %293
    %s296 = sor.u32 256, 24
    %297 = vbcast.lane.b32.xlu0 %v283, %s296
    %v298 = vpop.permute.xlu0 %297
    %v299 = vlaneseq
    %v300 = vshrl.u32 %v299, 7
    %v301 = vsub.s32 6, %v300
    %v302 = vrot.slane %v28, %v301
    %304 = vbcast.lane.b32.xlu0 %v302, 256
    %v305 = vpop.permute.xlu0 %304
    %s307 = sor.u32 256, 8
    %308 = vbcast.lane.b32.xlu0 %v302, %s307
    %v309 = vpop.permute.xlu0 %308
    %s311 = sor.u32 256, 16
    %312 = vbcast.lane.b32.xlu0 %v302, %s311
    %v313 = vpop.permute.xlu0 %312
    %s315 = sor.u32 256, 24
    %316 = vbcast.lane.b32.xlu0 %v302, %s315
    %v317 = vpop.permute.xlu0 %316
    %v318 = vlaneseq
    %v319 = vshrl.u32 %v318, 7
    %v320 = vsub.s32 7, %v319
    %v321 = vrot.slane %v28, %v320
    %323 = vbcast.lane.b32.xlu0 %v321, 256
    %v324 = vpop.permute.xlu0 %323
    %s326 = sor.u32 256, 8
    %327 = vbcast.lane.b32.xlu0 %v321, %s326
    %v328 = vpop.permute.xlu0 %327
    %s330 = sor.u32 256, 16
    %331 = vbcast.lane.b32.xlu0 %v321, %s330
    %v332 = vpop.permute.xlu0 %331
    %s334 = sor.u32 256, 24
    %335 = vbcast.lane.b32.xlu0 %v321, %s334
    %v336 = vpop.permute.xlu0 %335
    %v337 = vadd.f32 %v39, %v29
    %v338 = vadd.f32 %v43, %v30
    %v339 = vadd.f32 %v47, %v31
    %v340 = vadd.f32 %v51, %v32
    %v341 = vadd.f32 %v58, %v29
    %v342 = vadd.f32 %v62, %v30
    %v343 = vadd.f32 %v66, %v31
    %v344 = vadd.f32 %v70, %v32
    %v345 = vadd.f32 %v77, %v29
    %v346 = vadd.f32 %v81, %v30
    %v347 = vadd.f32 %v85, %v31
    %v348 = vadd.f32 %v89, %v32
    %v349 = vadd.f32 %v96, %v29
    %v350 = vadd.f32 %v100, %v30
    %v351 = vadd.f32 %v104, %v31
    %v352 = vadd.f32 %v108, %v32
    %v353 = vadd.f32 %v115, %v29
    %v354 = vadd.f32 %v119, %v30
    %v355 = vadd.f32 %v123, %v31
    %v356 = vadd.f32 %v127, %v32
    %v357 = vadd.f32 %v134, %v29
    %v358 = vadd.f32 %v138, %v30
    %v359 = vadd.f32 %v142, %v31
    %v360 = vadd.f32 %v146, %v32
    %v361 = vadd.f32 %v153, %v29
    %v362 = vadd.f32 %v157, %v30
    %v363 = vadd.f32 %v161, %v31
    %v364 = vadd.f32 %v165, %v32
    %v365 = vadd.f32 %v172, %v29
    %v366 = vadd.f32 %v176, %v30
    %v367 = vadd.f32 %v180, %v31
    %v368 = vadd.f32 %v184, %v32
    %v369 = vadd.f32 %v191, %v29
    %v370 = vadd.f32 %v195, %v30
    %v371 = vadd.f32 %v199, %v31
    %v372 = vadd.f32 %v203, %v32
    %v373 = vadd.f32 %v210, %v29
    %v374 = vadd.f32 %v214, %v30
    %v375 = vadd.f32 %v218, %v31
    %v376 = vadd.f32 %v222, %v32
    %v377 = vadd.f32 %v229, %v29
    %v378 = vadd.f32 %v233, %v30
    %v379 = vadd.f32 %v237, %v31
    %v380 = vadd.f32 %v241, %v32
    %v381 = vadd.f32 %v248, %v29
    %v382 = vadd.f32 %v252, %v30
    %v383 = vadd.f32 %v256, %v31
    %v384 = vadd.f32 %v260, %v32
    %v385 = vadd.f32 %v267, %v29
    %v386 = vadd.f32 %v271, %v30
    %v387 = vadd.f32 %v275, %v31
    %v388 = vadd.f32 %v279, %v32
    %v389 = vadd.f32 %v286, %v29
    %v390 = vadd.f32 %v290, %v30
    %v391 = vadd.f32 %v294, %v31
    %v392 = vadd.f32 %v298, %v32
    %v393 = vadd.f32 %v305, %v29
    %v394 = vadd.f32 %v309, %v30
    %v395 = vadd.f32 %v313, %v31
    %v396 = vadd.f32 %v317, %v32
    %v397 = vadd.f32 %v324, %v29
    %v398 = vadd.f32 %v328, %v30
    %v399 = vadd.f32 %v332, %v31
    %v400 = vadd.f32 %v336, %v32
    %v401 = vmax.f32 %v337, 0.0
    %v402 = vmax.f32 %v338, 0.0
    %v403 = vmax.f32 %v339, 0.0
    %v404 = vmax.f32 %v340, 0.0
    %v405 = vmax.f32 %v341, 0.0
    %v406 = vmax.f32 %v342, 0.0
    %v407 = vmax.f32 %v343, 0.0
    %v408 = vmax.f32 %v344, 0.0
    %v409 = vmax.f32 %v345, 0.0
    %v410 = vmax.f32 %v346, 0.0
    %v411 = vmax.f32 %v347, 0.0
    %v412 = vmax.f32 %v348, 0.0
    %v413 = vmax.f32 %v349, 0.0
    %v414 = vmax.f32 %v350, 0.0
    %v415 = vmax.f32 %v351, 0.0
    %v416 = vmax.f32 %v352, 0.0
    %v417 = vmax.f32 %v353, 0.0
    %v418 = vmax.f32 %v354, 0.0
    %v419 = vmax.f32 %v355, 0.0
    %v420 = vmax.f32 %v356, 0.0
    %v421 = vmax.f32 %v357, 0.0
    %v422 = vmax.f32 %v358, 0.0
    %v423 = vmax.f32 %v359, 0.0
    %v424 = vmax.f32 %v360, 0.0
    %v425 = vmax.f32 %v361, 0.0
    %v426 = vmax.f32 %v362, 0.0
    %v427 = vmax.f32 %v363, 0.0
    %v428 = vmax.f32 %v364, 0.0
    %v429 = vmax.f32 %v365, 0.0
    %v430 = vmax.f32 %v366, 0.0
    %v431 = vmax.f32 %v367, 0.0
    %v432 = vmax.f32 %v368, 0.0
    %v433 = vmax.f32 %v369, 0.0
    %v434 = vmax.f32 %v370, 0.0
    %v435 = vmax.f32 %v371, 0.0
    %v436 = vmax.f32 %v372, 0.0
    %v437 = vmax.f32 %v373, 0.0
    %v438 = vmax.f32 %v374, 0.0
    %v439 = vmax.f32 %v375, 0.0
    %v440 = vmax.f32 %v376, 0.0
    %v441 = vmax.f32 %v377, 0.0
    %v442 = vmax.f32 %v378, 0.0
    %v443 = vmax.f32 %v379, 0.0
    %v444 = vmax.f32 %v380, 0.0
    %v445 = vmax.f32 %v381, 0.0
    %v446 = vmax.f32 %v382, 0.0
    %v447 = vmax.f32 %v383, 0.0
    %v448 = vmax.f32 %v384, 0.0
    %v449 = vmax.f32 %v385, 0.0
    %v450 = vmax.f32 %v386, 0.0
    %v451 = vmax.f32 %v387, 0.0
    %v452 = vmax.f32 %v388, 0.0
    %v453 = vmax.f32 %v389, 0.0
    %v454 = vmax.f32 %v390, 0.0
    %v455 = vmax.f32 %v391, 0.0
    %v456 = vmax.f32 %v392, 0.0
    %v457 = vmax.f32 %v393, 0.0
    %v458 = vmax.f32 %v394, 0.0
    %v459 = vmax.f32 %v395, 0.0
    %v460 = vmax.f32 %v396, 0.0
    %v461 = vmax.f32 %v397, 0.0
    %v462 = vmax.f32 %v398, 0.0
    %v463 = vmax.f32 %v399, 0.0
    %v464 = vmax.f32 %v400, 0.0
    %v465 = vld [vmem:[%s2] sm:$0xff]
    %v466 = vld [vmem:[%s2 + $0x8] sm:$0xff]
    %v467 = vld [vmem:[%s2 + $0x10] sm:$0xff]
    %v468 = vld [vmem:[%s2 + $0x18] sm:$0xff]
    %470 = vset.pattern.permute.xlu0 0
    %471 = vperm.xlu0 %470, %v465
    %v472 = vpop.permute.xlu0 %471
    %475 = vset.pattern.permute.xlu0 0
    %476 = vperm.xlu0 %475, %v466
    %v477 = vpop.permute.xlu0 %476
    %480 = vset.pattern.permute.xlu0 0
    %481 = vperm.xlu0 %480, %v467
    %v482 = vpop.permute.xlu0 %481
    %485 = vset.pattern.permute.xlu0 0
    %486 = vperm.xlu0 %485, %v468
    %v487 = vpop.permute.xlu0 %486
    %v489 = vmul.f32 %v401, %v472
    %v490 = vmul.f32 %v402, %v477
    %v491 = vmul.f32 %v403, %v482
    %v492 = vmul.f32 %v404, %v487
    %v493 = vmul.f32 %v405, %v472
    %v494 = vmul.f32 %v406, %v477
    %v495 = vmul.f32 %v407, %v482
    %v496 = vmul.f32 %v408, %v487
    %v497 = vmul.f32 %v409, %v472
    %v498 = vmul.f32 %v410, %v477
    %v499 = vmul.f32 %v411, %v482
    %v500 = vmul.f32 %v412, %v487
    %v501 = vmul.f32 %v413, %v472
    %v502 = vmul.f32 %v414, %v477
    %v503 = vmul.f32 %v415, %v482
    %v504 = vmul.f32 %v416, %v487
    %v505 = vmul.f32 %v417, %v472
    %v506 = vmul.f32 %v418, %v477
    %v507 = vmul.f32 %v419, %v482
    %v508 = vmul.f32 %v420, %v487
    %v509 = vmul.f32 %v421, %v472
    %v510 = vmul.f32 %v422, %v477
    %v511 = vmul.f32 %v423, %v482
    %v512 = vmul.f32 %v424, %v487
    %v513 = vmul.f32 %v425, %v472
    %v514 = vmul.f32 %v426, %v477
    %v515 = vmul.f32 %v427, %v482
    %v516 = vmul.f32 %v428, %v487
    %v517 = vmul.f32 %v429, %v472
    %v518 = vmul.f32 %v430, %v477
    %v519 = vmul.f32 %v431, %v482
    %v520 = vmul.f32 %v432, %v487
    %v521 = vmul.f32 %v433, %v472
    %v522 = vmul.f32 %v434, %v477
    %v523 = vmul.f32 %v435, %v482
    %v524 = vmul.f32 %v436, %v487
    %v525 = vmul.f32 %v437, %v472
    %v526 = vmul.f32 %v438, %v477
    %v527 = vmul.f32 %v439, %v482
    %v528 = vmul.f32 %v440, %v487
    %v529 = vmul.f32 %v441, %v472
    %v530 = vmul.f32 %v442, %v477
    %v531 = vmul.f32 %v443, %v482
    %v532 = vmul.f32 %v444, %v487
    %v533 = vmul.f32 %v445, %v472
    %v534 = vmul.f32 %v446, %v477
    %v535 = vmul.f32 %v447, %v482
    %v536 = vmul.f32 %v448, %v487
    %v537 = vmul.f32 %v449, %v472
    %v538 = vmul.f32 %v450, %v477
    %v539 = vmul.f32 %v451, %v482
    %v540 = vmul.f32 %v452, %v487
    %v541 = vmul.f32 %v453, %v472
    %v542 = vmul.f32 %v454, %v477
    %v543 = vmul.f32 %v455, %v482
    %v544 = vmul.f32 %v456, %v487
    %v545 = vmul.f32 %v457, %v472
    %v546 = vmul.f32 %v458, %v477
    %v547 = vmul.f32 %v459, %v482
    %v548 = vmul.f32 %v460, %v487
    %v549 = vmul.f32 %v461, %v472
    %v550 = vmul.f32 %v462, %v477
    %v551 = vmul.f32 %v463, %v482
    %v552 = vmul.f32 %v464, %v487
    %vm553 = vcmask 130048
    %v554 = vsel %vm553, %v489, 0.0
    %v555 = vsel %vm553, %v490, 0.0
    %v556 = vadd.f32 %v554, %v555
    %v557 = vsel %vm553, %v491, 0.0
    %v558 = vadd.f32 %v556, %v557
    %v559 = vsel %vm553, %v492, 0.0
    %v560 = vadd.f32 %v558, %v559
    %v561 = vrot.slane %v560, 4
    %v562 = vadd.f32 %v560, %v561
    %v563 = vrot.slane %v562, 2
    %v564 = vadd.f32 %v562, %v563
    %v565 = vrot.slane %v564, 1
    %v566 = vadd.f32 %v564, %v565
    %v567 = vsel %vm553, %v493, 0.0
    %v568 = vsel %vm553, %v494, 0.0
    %v569 = vadd.f32 %v567, %v568
    %v570 = vsel %vm553, %v495, 0.0
    %v571 = vadd.f32 %v569, %v570
    %v572 = vsel %vm553, %v496, 0.0
    %v573 = vadd.f32 %v571, %v572
    %v574 = vrot.slane %v573, 4
    %v575 = vadd.f32 %v573, %v574
    %v576 = vrot.slane %v575, 2
    %v577 = vadd.f32 %v575, %v576
    %v578 = vrot.slane %v577, 1
    %v579 = vadd.f32 %v577, %v578
    %v580 = vsel %vm553, %v497, 0.0
    %v581 = vsel %vm553, %v498, 0.0
    %v582 = vadd.f32 %v580, %v581
    %v583 = vsel %vm553, %v499, 0.0
    %v584 = vadd.f32 %v582, %v583
    %v585 = vsel %vm553, %v500, 0.0
    %v586 = vadd.f32 %v584, %v585
    %v587 = vrot.slane %v586, 4
    %v588 = vadd.f32 %v586, %v587
    %v589 = vrot.slane %v588, 2
    %v590 = vadd.f32 %v588, %v589
    %v591 = vrot.slane %v590, 1
    %v592 = vadd.f32 %v590, %v591
    %v593 = vsel %vm553, %v501, 0.0
    %v594 = vsel %vm553, %v502, 0.0
    %v595 = vadd.f32 %v593, %v594
    %v596 = vsel %vm553, %v503, 0.0
    %v597 = vadd.f32 %v595, %v596
    %v598 = vsel %vm553, %v504, 0.0
    %v599 = vadd.f32 %v597, %v598
    %v600 = vrot.slane %v599, 4
    %v601 = vadd.f32 %v599, %v600
    %v602 = vrot.slane %v601, 2
    %v603 = vadd.f32 %v601, %v602
    %v604 = vrot.slane %v603, 1
    %v605 = vadd.f32 %v603, %v604
    %v606 = vsel %vm553, %v505, 0.0
    %v607 = vsel %vm553, %v506, 0.0
    %v608 = vadd.f32 %v606, %v607
    %v609 = vsel %vm553, %v507, 0.0
    %v610 = vadd.f32 %v608, %v609
    %v611 = vsel %vm553, %v508, 0.0
    %v612 = vadd.f32 %v610, %v611
    %v613 = vrot.slane %v612, 4
    %v614 = vadd.f32 %v612, %v613
    %v615 = vrot.slane %v614, 2
    %v616 = vadd.f32 %v614, %v615
    %v617 = vrot.slane %v616, 1
    %v618 = vadd.f32 %v616, %v617
    %v619 = vsel %vm553, %v509, 0.0
    %v620 = vsel %vm553, %v510, 0.0
    %v621 = vadd.f32 %v619, %v620
    %v622 = vsel %vm553, %v511, 0.0
    %v623 = vadd.f32 %v621, %v622
    %v624 = vsel %vm553, %v512, 0.0
    %v625 = vadd.f32 %v623, %v624
    %v626 = vrot.slane %v625, 4
    %v627 = vadd.f32 %v625, %v626
    %v628 = vrot.slane %v627, 2
    %v629 = vadd.f32 %v627, %v628
    %v630 = vrot.slane %v629, 1
    %v631 = vadd.f32 %v629, %v630
    %v632 = vsel %vm553, %v513, 0.0
    %v633 = vsel %vm553, %v514, 0.0
    %v634 = vadd.f32 %v632, %v633
    %v635 = vsel %vm553, %v515, 0.0
    %v636 = vadd.f32 %v634, %v635
    %v637 = vsel %vm553, %v516, 0.0
    %v638 = vadd.f32 %v636, %v637
    %v639 = vrot.slane %v638, 4
    %v640 = vadd.f32 %v638, %v639
    %v641 = vrot.slane %v640, 2
    %v642 = vadd.f32 %v640, %v641
    %v643 = vrot.slane %v642, 1
    %v644 = vadd.f32 %v642, %v643
    %v645 = vsel %vm553, %v517, 0.0
    %v646 = vsel %vm553, %v518, 0.0
    %v647 = vadd.f32 %v645, %v646
    %v648 = vsel %vm553, %v519, 0.0
    %v649 = vadd.f32 %v647, %v648
    %v650 = vsel %vm553, %v520, 0.0
    %v651 = vadd.f32 %v649, %v650
    %v652 = vrot.slane %v651, 4
    %v653 = vadd.f32 %v651, %v652
    %v654 = vrot.slane %v653, 2
    %v655 = vadd.f32 %v653, %v654
    %v656 = vrot.slane %v655, 1
    %v657 = vadd.f32 %v655, %v656
    %v658 = vsel %vm553, %v521, 0.0
    %v659 = vsel %vm553, %v522, 0.0
    %v660 = vadd.f32 %v658, %v659
    %v661 = vsel %vm553, %v523, 0.0
    %v662 = vadd.f32 %v660, %v661
    %v663 = vsel %vm553, %v524, 0.0
    %v664 = vadd.f32 %v662, %v663
    %v665 = vrot.slane %v664, 4
    %v666 = vadd.f32 %v664, %v665
    %v667 = vrot.slane %v666, 2
    %v668 = vadd.f32 %v666, %v667
    %v669 = vrot.slane %v668, 1
    %v670 = vadd.f32 %v668, %v669
    %v671 = vsel %vm553, %v525, 0.0
    %v672 = vsel %vm553, %v526, 0.0
    %v673 = vadd.f32 %v671, %v672
    %v674 = vsel %vm553, %v527, 0.0
    %v675 = vadd.f32 %v673, %v674
    %v676 = vsel %vm553, %v528, 0.0
    %v677 = vadd.f32 %v675, %v676
    %v678 = vrot.slane %v677, 4
    %v679 = vadd.f32 %v677, %v678
    %v680 = vrot.slane %v679, 2
    %v681 = vadd.f32 %v679, %v680
    %v682 = vrot.slane %v681, 1
    %v683 = vadd.f32 %v681, %v682
    %v684 = vsel %vm553, %v529, 0.0
    %v685 = vsel %vm553, %v530, 0.0
    %v686 = vadd.f32 %v684, %v685
    %v687 = vsel %vm553, %v531, 0.0
    %v688 = vadd.f32 %v686, %v687
    %v689 = vsel %vm553, %v532, 0.0
    %v690 = vadd.f32 %v688, %v689
    %v691 = vrot.slane %v690, 4
    %v692 = vadd.f32 %v690, %v691
    %v693 = vrot.slane %v692, 2
    %v694 = vadd.f32 %v692, %v693
    %v695 = vrot.slane %v694, 1
    %v696 = vadd.f32 %v694, %v695
    %v697 = vsel %vm553, %v533, 0.0
    %v698 = vsel %vm553, %v534, 0.0
    %v699 = vadd.f32 %v697, %v698
    %v700 = vsel %vm553, %v535, 0.0
    %v701 = vadd.f32 %v699, %v700
    %v702 = vsel %vm553, %v536, 0.0
    %v703 = vadd.f32 %v701, %v702
    %v704 = vrot.slane %v703, 4
    %v705 = vadd.f32 %v703, %v704
    %v706 = vrot.slane %v705, 2
    %v707 = vadd.f32 %v705, %v706
    %v708 = vrot.slane %v707, 1
    %v709 = vadd.f32 %v707, %v708
    %v710 = vsel %vm553, %v537, 0.0
    %v711 = vsel %vm553, %v538, 0.0
    %v712 = vadd.f32 %v710, %v711
    %v713 = vsel %vm553, %v539, 0.0
    %v714 = vadd.f32 %v712, %v713
    %v715 = vsel %vm553, %v540, 0.0
    %v716 = vadd.f32 %v714, %v715
    %v717 = vrot.slane %v716, 4
    %v718 = vadd.f32 %v716, %v717
    %v719 = vrot.slane %v718, 2
    %v720 = vadd.f32 %v718, %v719
    %v721 = vrot.slane %v720, 1
    %v722 = vadd.f32 %v720, %v721
    %v723 = vsel %vm553, %v541, 0.0
    %v724 = vsel %vm553, %v542, 0.0
    %v725 = vadd.f32 %v723, %v724
    %v726 = vsel %vm553, %v543, 0.0
    %v727 = vadd.f32 %v725, %v726
    %v728 = vsel %vm553, %v544, 0.0
    %v729 = vadd.f32 %v727, %v728
    %v730 = vrot.slane %v729, 4
    %v731 = vadd.f32 %v729, %v730
    %v732 = vrot.slane %v731, 2
    %v733 = vadd.f32 %v731, %v732
    %v734 = vrot.slane %v733, 1
    %v735 = vadd.f32 %v733, %v734
    %v736 = vsel %vm553, %v545, 0.0
    %v737 = vsel %vm553, %v546, 0.0
    %v738 = vadd.f32 %v736, %v737
    %v739 = vsel %vm553, %v547, 0.0
    %v740 = vadd.f32 %v738, %v739
    %v741 = vsel %vm553, %v548, 0.0
    %v742 = vadd.f32 %v740, %v741
    %v743 = vrot.slane %v742, 4
    %v744 = vadd.f32 %v742, %v743
    %v745 = vrot.slane %v744, 2
    %v746 = vadd.f32 %v744, %v745
    %v747 = vrot.slane %v746, 1
    %v748 = vadd.f32 %v746, %v747
    %v749 = vsel %vm553, %v549, 0.0
    %v750 = vsel %vm553, %v550, 0.0
    %v751 = vadd.f32 %v749, %v750
    %v752 = vsel %vm553, %v551, 0.0
    %v753 = vadd.f32 %v751, %v752
    %v754 = vsel %vm553, %v552, 0.0
    %v755 = vadd.f32 %v753, %v754
    %v756 = vrot.slane %v755, 4
    %v757 = vadd.f32 %v755, %v756
    %v758 = vrot.slane %v757, 2
    %v759 = vadd.f32 %v757, %v758
    %v760 = vrot.slane %v759, 1
    %v761 = vadd.f32 %v759, %v760
    %v762 = vld [vmem:[#allocation4] sm:$0x1]
    %v764 = vlaneseq
    %v765 = vshrl.u32 %v764, 7
    %v766 = vsub.s32 0, %v765
    %v767 = vrot.slane %v762, %v766
    %768 = vset.pattern.permute.xlu0 0
    %769 = vperm.xlu0 %768, %v767
    %v770 = vpop.permute.xlu0 %769
    %v772 = vadd.f32 %v566, %v770
    %v773 = vadd.f32 %v579, %v770
    %v774 = vadd.f32 %v592, %v770
    %v775 = vadd.f32 %v605, %v770
    %v776 = vadd.f32 %v618, %v770
    %v777 = vadd.f32 %v631, %v770
    %v778 = vadd.f32 %v644, %v770
    %v779 = vadd.f32 %v657, %v770
    %v780 = vadd.f32 %v670, %v770
    %v781 = vadd.f32 %v683, %v770
    %v782 = vadd.f32 %v696, %v770
    %v783 = vadd.f32 %v709, %v770
    %v784 = vadd.f32 %v722, %v770
    %v785 = vadd.f32 %v735, %v770
    %v786 = vadd.f32 %v748, %v770
    %v787 = vadd.f32 %v761, %v770
    %v788 = vld [vmem:[#allocation2] sm:$0x1]
    %v789 = vsel %vm553, %v772, -inf
    %v790 = vsel %vm553, %v773, -inf
    %v791 = vsel %vm553, %v774, -inf
    %v792 = vsel %vm553, %v775, -inf
    %v793 = vsel %vm553, %v776, -inf
    %v794 = vmax.f32 %v789, %v793
    %v795 = vsel %vm553, %v777, -inf
    %v796 = vmax.f32 %v790, %v795
    %v797 = vsel %vm553, %v778, -inf
    %v798 = vmax.f32 %v791, %v797
    %v799 = vsel %vm553, %v779, -inf
    %v800 = vmax.f32 %v792, %v799
    %v801 = vsel %vm553, %v780, -inf
    %v802 = vmax.f32 %v794, %v801
    %v803 = vsel %vm553, %v781, -inf
    %v804 = vmax.f32 %v796, %v803
    %v805 = vsel %vm553, %v782, -inf
    %v806 = vmax.f32 %v798, %v805
    %v807 = vsel %vm553, %v783, -inf
    %v808 = vmax.f32 %v800, %v807
    %v809 = vsel %vm553, %v784, -inf
    %v810 = vmax.f32 %v802, %v809
    %v811 = vsel %vm553, %v785, -inf
    %v812 = vmax.f32 %v804, %v811
    %v813 = vsel %vm553, %v786, -inf
    %v814 = vmax.f32 %v806, %v813
    %v815 = vsel %vm553, %v787, -inf
    %v816 = vmax.f32 %v808, %v815
    %v817 = vmax.f32 %v810, %v812
    %v818 = vmax.f32 %v814, %v816
    %v819 = vmax.f32 %v817, %v818
    %v820 = vmax.f32 %v788, %v819
    %v821 = vsub.f32 %v788, %v820
    %v822 = vmul.f32 %v821, 1.442695
    %v823 = vpow.pop %v822
    %v824 = vld [vmem:[#allocation3] sm:$0x1]
    %v825 = vmul.f32 %v823, %v824
    %v827 = vlaneseq
    %v828 = vshrl.u32 %v827, 7
    %v829 = vsub.s32 0, %v828
    %v830 = vrot.slane %v820, %v829
    %v832 = vsub.f32 %v772, %v830
    %v833 = vsub.f32 %v773, %v830
    %v834 = vsub.f32 %v774, %v830
    %v835 = vsub.f32 %v775, %v830
    %v836 = vsub.f32 %v776, %v830
    %v837 = vsub.f32 %v777, %v830
    %v838 = vsub.f32 %v778, %v830
    %v839 = vsub.f32 %v779, %v830
    %v840 = vsub.f32 %v780, %v830
    %v841 = vsub.f32 %v781, %v830
    %v842 = vsub.f32 %v782, %v830
    %v843 = vsub.f32 %v783, %v830
    %v844 = vsub.f32 %v784, %v830
    %v845 = vsub.f32 %v785, %v830
    %v846 = vsub.f32 %v786, %v830
    %v847 = vsub.f32 %v787, %v830
    %v848 = vmul.f32 %v832, 1.442695
    %v849 = vpow.pop %v848
    %v850 = vmul.f32 %v833, 1.442695
    %v851 = vpow.pop %v850
    %v852 = vmul.f32 %v834, 1.442695
    %v853 = vpow.pop %v852
    %v854 = vmul.f32 %v835, 1.442695
    %v855 = vpow.pop %v854
    %v856 = vmul.f32 %v836, 1.442695
    %v857 = vpow.pop %v856
    %v858 = vmul.f32 %v837, 1.442695
    %v859 = vpow.pop %v858
    %v860 = vmul.f32 %v838, 1.442695
    %v861 = vpow.pop %v860
    %v862 = vmul.f32 %v839, 1.442695
    %v863 = vpow.pop %v862
    %v864 = vmul.f32 %v840, 1.442695
    %v865 = vpow.pop %v864
    %v866 = vmul.f32 %v841, 1.442695
    %v867 = vpow.pop %v866
    %v868 = vmul.f32 %v842, 1.442695
    %v869 = vpow.pop %v868
    %v870 = vmul.f32 %v843, 1.442695
    %v871 = vpow.pop %v870
    %v872 = vmul.f32 %v844, 1.442695
    %v873 = vpow.pop %v872
    %v874 = vmul.f32 %v845, 1.442695
    %v875 = vpow.pop %v874
    %v876 = vmul.f32 %v846, 1.442695
    %v877 = vpow.pop %v876
    %v878 = vmul.f32 %v847, 1.442695
    %v879 = vpow.pop %v878
    %v896 = vrot.slane %v851, 7
    %vm897 = vcmask 1041409
    %v898 = vsel %vm897, %v896, %v849
    %v899 = vrot.slane %v853, 6
    %vm900 = vcmask 1042434
    %v901 = vsel %vm900, %v899, %v898
    %v902 = vrot.slane %v855, 5
    %vm903 = vcmask 1043459
    %v904 = vsel %vm903, %v902, %v901
    %v905 = vrot.slane %v857, 4
    %vm906 = vcmask 1044484
    %v907 = vsel %vm906, %v905, %v904
    %v908 = vrot.slane %v859, 3
    %vm909 = vcmask 1045509
    %v910 = vsel %vm909, %v908, %v907
    %v911 = vrot.slane %v861, 2
    %vm912 = vcmask 1046534
    %v913 = vsel %vm912, %v911, %v910
    %v914 = vrot.slane %v863, 1
    %vm915 = vcmask 1047559
    %v916 = vsel %vm915, %v914, %v913
    %v917 = vrot.slane %v867, 7
    %v918 = vsel %vm897, %v917, %v865
    %v919 = vrot.slane %v869, 6
    %v920 = vsel %vm900, %v919, %v918
    %v921 = vrot.slane %v871, 5
    %v922 = vsel %vm903, %v921, %v920
    %v923 = vrot.slane %v873, 4
    %v924 = vsel %vm906, %v923, %v922
    %v925 = vrot.slane %v875, 3
    %v926 = vsel %vm909, %v925, %v924
    %v927 = vrot.slane %v877, 2
    %v928 = vsel %vm912, %v927, %v926
    %v929 = vrot.slane %v879, 1
    %v930 = vsel %vm915, %v929, %v928
    %v933 = vsel %vm553, %v916, 0.0
    %v934 = vsel %vm553, %v930, 0.0
    %v935 = vadd.f32 %v933, %v934
    %v936 = vrot.slane %v935, 4
    %v937 = vadd.f32 %v935, %v936
    %v938 = vrot.slane %v937, 2
    %v939 = vadd.f32 %v937, %v938
    %v940 = vrot.slane %v939, 1
    %v941 = vadd.f32 %v939, %v940
    %v942 = vadd.f32 %v825, %v941
    %vm943 = vcmask 122880
    %944 = vst.msk [vmem:[#allocation3] sm:$0x1] %vm943, %v942
    %945 = vst.msk [vmem:[#allocation2] sm:$0x1] %vm943, %v820
    // Predicated region
    $region22: #{tpu_custom_call.1} parent=1 // pred_check
      %p946 = pneg %p20
    $region23: #{tpu_custom_call.1} parent=1 // pred_check_branch
      %948 = sbr.rel (%p946) target = $region25
    $region24: #{tpu_custom_call.1} parent=1 // pred_region
      %v949 = vld [vmem:[#allocation2] sm:$0x1]
      %v950 = vld [vmem:[#allocation3] sm:$0x1]
      %v951 = vlog2.pop %v950
      %v952 = vmul.f32 %v951, 0.6931472
      %v953 = vadd.f32 %v949, %v952
      %954 = vst.msk [vmem:[#allocation5] sm:$0x1] %vm943, %v953
    $region25: #{tpu_custom_call.1} parent=1 // pred_fallthru
      _
    // Predicated region
    $region26: #{tpu_custom_call.1} parent=1 // pred_check
      _
    $region27: #{tpu_custom_call.1} parent=1 // pred_check_branch
      %956 = sbr.rel (0) target = $region29
    $region28: #{tpu_custom_call.1} parent=1 // pred_region
      %s958 = ssub.s32 16, 16
      %959 = vsyncadd [#allocation6], %s958
      %s961 = sshll.u32 [#allocation5], 4
      %s962 = int_to_ptr.vmem [resolvable:$true] %s961
      %964 = dma.vmem_to_hbm [thread:$0]  %s962, 16, %s4, [#allocation6]
    $region29: #{tpu_custom_call.1} parent=1 // pred_fallthru
      _
    // Predicated region
    $region30: #{tpu_custom_call.1} parent=1 // pred_check
      _
    $region31: #{tpu_custom_call.1} parent=1 // pred_check_branch
      %966 = sbr.rel (0) target = $region33
    $region32: #{tpu_custom_call.1} parent=1 // pred_region
      %967 = dma.done [#allocation6], 16
    $region33: #{tpu_custom_call.1} parent=1 // pred_fallthru
      _
    %968 = vsyncpa [#allocation6], 1

</llo_original>
